<compile_context>
chip_gen: v5e
topology: v5e:2x2
jax: 0.10.0
libtpu: 0.0.40
codegen_flags: <defaults>
</compile_context>

<pallas_src>
import functools
import math

import jax
import jax.numpy as jnp
from jax.experimental import pallas as pl
from jax.experimental.pallas import tpu as pltpu

K_NEIGHBOURS = 3   # DHGCNLayer default
K_CENTROIDS = 4    # DHGCNLayer default
LANE = 128         # TPU lane width; channel and hyperedge dims padded to this

VMEM = pltpu.MemorySpace.VMEM


def _vmem_spec():
    return pl.BlockSpec(memory_space=VMEM)


def _round_up(x, m):
    return ((x + m - 1) // m) * m


# ----------------------------- Pallas kernels -----------------------------
#
# Per layer the hot path is the two-step hypergraph message passing
#     x_1 = H^T (X W1)                 (node -> hyperedge, no update)
#     x_0 = sigmoid(H (x_1 W2))        (hyperedge -> node, sigmoid update)
# fused into one kernel (matches topomodelx: update_func=None on 0->1,
# "sigmoid" only on 1->0). All operands are lane-padded to 128 and stay f32.


def _two_step_conv(xfc_ref, inc_ref, inct_ref, w1_ref, w2_ref):
    """Returns sigmoid(H @ ((H^T @ (X @ W1)) @ W2)) in f32, shape [N, C_pad]."""
    m1 = jnp.dot(xfc_ref[...], w1_ref[...],
                 preferred_element_type=jnp.float32)        # [N, C_pad]
    # node -> hyperedge: use the pre-transposed H^T so the contraction is over
    # the streamed operand's LAST dim (no in-kernel XLU transpose of H).
    x1 = jnp.dot(inct_ref[...], m1,
                 preferred_element_type=jnp.float32)        # [E_pad, C_pad]
    m2 = jnp.dot(x1, w2_ref[...],
                 preferred_element_type=jnp.float32)        # [E_pad, C_pad]
    y = jnp.dot(inc_ref[...], m2,
                preferred_element_type=jnp.float32)         # [N, C_pad]
    return jax.nn.sigmoid(y)


def _dhgcn_layer_kernel(xfc_ref, inc_ref, inct_ref, w1_ref, w2_ref, o_ref):
    # Lane-dense [N, 128] f32 store (unmasked vst); caller slices [:, :C].
    o_ref[...] = _two_step_conv(xfc_ref, inc_ref, inct_ref, w1_ref, w2_ref)


def _dhgcn_last_layer_kernel(xfc_ref, inc_ref, inct_ref, w1_ref, w2_ref,
                             lw_ref, lb_ref, o_ref):
    y = _two_step_conv(xfc_ref, inc_ref, inct_ref, w1_ref, w2_ref)   # [N, C_pad]
    # Fused head: global mean pool over nodes + Linear(C, 1).
    # Row-sum via an M=1 MXU matmul is fine at N=8 (TODO(synk): in the tiled
    # version, ride the existing f32 accumulator instead). The 1/N scale and
    # the channel padding (zero rows kill the sigmoid(0)=0.5 pad columns) are
    # folded into lw_ref by the caller.
    n = y.shape[0]
    pooled = jnp.dot(jnp.ones((1, n), jnp.float32), y,
                     preferred_element_type=jnp.float32)             # [1, C_pad]
    o_ref[...] = (
        jnp.dot(pooled, lw_ref[...], preferred_element_type=jnp.float32)
        + lb_ref[...]
    )                                                                # [1, 1]


# ------------------------------- wrappers ----------------------------------

def _pad_operands(x_fc, incidence, w1, w2):
    """Zero-pad channel and hyperedge dims to multiples of 128 (lane-dense)."""
    n, c = x_fc.shape
    e = incidence.shape[1]
    c_pad = _round_up(max(c, LANE), LANE)
    e_pad = _round_up(max(e, LANE), LANE)
    x_p = jnp.pad(x_fc.astype(jnp.float32), ((0, 0), (0, c_pad - c)))
    inc_p = jnp.pad(incidence.astype(jnp.float32), ((0, 0), (0, e_pad - e)))
    w1_p = jnp.pad(w1.astype(jnp.float32), ((0, c_pad - c), (0, c_pad - c)))
    w2_p = jnp.pad(w2.astype(jnp.float32), ((0, c_pad - c), (0, c_pad - c)))
    return x_p, inc_p, w1_p, w2_p, c_pad


def pallas_dhgcn_layer(x_fc, incidence, w1, w2):
    """x_fc: [N, C], incidence: [N, E], w1/w2: [C, C] -> [N, C_pad] f32."""
    n, _ = x_fc.shape
    x_p, inc_p, w1_p, w2_p, c_pad = _pad_operands(x_fc, incidence, w1, w2)
    inc_t = inc_p.T   # [E_pad, N]; one extra tiny read beats an in-kernel transpose
    return pl.pallas_call(
        _dhgcn_layer_kernel,
        out_shape=jax.ShapeDtypeStruct((n, c_pad), jnp.float32),
        in_specs=[_vmem_spec()] * 5,
        out_specs=_vmem_spec(),
    )(x_p, inc_p, inc_t, w1_p, w2_p)


def pallas_dhgcn_last_layer(x_fc, incidence, w1, w2, lin_w, lin_b):
    """Last layer fused with the head (mean pool + Linear(C, 1)). Returns [1, 1]."""
    n, c = x_fc.shape
    x_p, inc_p, w1_p, w2_p, c_pad = _pad_operands(x_fc, incidence, w1, w2)
    inc_t = inc_p.T
    # Fold the 1/N of the mean pool into the head weight; zero-pad rows so the
    # sigmoid(0)=0.5 padding columns of y contribute nothing.
    lin_w_p = jnp.pad((lin_w / n).astype(jnp.float32), ((0, c_pad - c), (0, 0)))
    return pl.pallas_call(
        _dhgcn_last_layer_kernel,
        out_shape=jax.ShapeDtypeStruct((1, 1), jnp.float32),
        in_specs=[_vmem_spec()] * 7,
        out_specs=_vmem_spec(),
    )(x_p, inc_p, inc_t, w1_p, w2_p, lin_w_p, lin_b.astype(jnp.float32))


# ----------------------- dynamic topology (JAX glue) -----------------------
# Data-dependent top_k / argmin / one_hot — no clean Pallas equivalent, kept
# in plain JAX so XLA fuses it with the fc matmul that feeds it.

def _pairwise_sqdist(a, b):
    # Gram form: one MXU matmul + rank-1 adds instead of an [N, M, C] broadcast.
    a2 = jnp.sum(a * a, axis=-1, keepdims=True)          # [N, 1]
    b2 = jnp.sum(b * b, axis=-1, keepdims=True).T        # [1, M]
    d = a2 + b2 - 2.0 * (a @ b.T)
    return jnp.maximum(d, 0.0)


def knn_incidence(features, k_neighbours):
    """Local hyperedges: hyperedge j = {node j} U kNN(node j) in feature space."""
    n = features.shape[0]
    d = _pairwise_sqdist(features, features)
    d = d + jnp.eye(n, dtype=d.dtype) * 1e9          # exclude self from the kNN search
    _, idx = jax.lax.top_k(-d, k_neighbours)         # [n, k] nearest neighbours per node
    inc = jnp.zeros((n, n), dtype=jnp.float32)
    inc = inc.at[idx, jnp.arange(n)[:, None]].set(1.0)   # neighbour m belongs to edge j
    inc = inc.at[jnp.arange(n), jnp.arange(n)].set(1.0)  # node j belongs to its own edge
    return inc                                           # [n_nodes, n_nodes]


def kmeans_incidence(features, k_centroids, n_iters=10):
    """Global hyperedges: one-hot cluster assignment from k-means."""
    # TODO(synk): torch reference seeds centroids with randperm; we use a
    # deterministic init (first k points) and a fixed iteration count.
    centroids0 = features[:k_centroids]

    def body(_, centroids):
        d = _pairwise_sqdist(features, centroids)
        assign = jnp.argmin(d, axis=1)
        onehot = jax.nn.one_hot(assign, k_centroids, dtype=jnp.float32)   # [n, k]
        counts = onehot.sum(axis=0)                                       # [k]
        sums = onehot.T @ features                                        # [k, C]
        return jnp.where(
            counts[:, None] > 0,
            sums / jnp.maximum(counts, 1.0)[:, None],
            centroids,
        )

    centroids = jax.lax.fori_loop(0, n_iters, body, centroids0)
    d = _pairwise_sqdist(features, centroids)
    assign = jnp.argmin(d, axis=1)
    return jax.nn.one_hot(assign, k_centroids, dtype=jnp.float32)         # [n, k_centroids]


# ------------------------------- parameters --------------------------------

def init_dhgcn_params(key, channels_node, n_layers=2):
    c = channels_node
    scale = 1.0 / math.sqrt(c)
    params = {"layers": []}
    for _ in range(n_layers):
        key, k_fc, k_w1, k_w2 = jax.random.split(key, 4)
        params["layers"].append(
            {
                "fc_w": jax.random.uniform(k_fc, (c, c), jnp.float32, -scale, scale),
                "fc_b": jnp.zeros((1, c), jnp.float32),
                # topomodelx Conv weights: (in_channels, out_channels)
                "w_0_to_1": jax.random.uniform(k_w1, (c, c), jnp.float32, -scale, scale),
                "w_1_to_0": jax.random.uniform(k_w2, (c, c), jnp.float32, -scale, scale),
            }
        )
    key, k_lin = jax.random.split(key)
    params["lin_w"] = jax.random.uniform(k_lin, (c, 1), jnp.float32, -scale, scale)
    params["lin_b"] = jnp.zeros((1, 1), jnp.float32)
    return params


# -------------------------------- forward ----------------------------------

def dhgcn_forward(params, x_0):
    """x_0: [n_nodes, channels_node] -> scalar label for the whole complex."""
    x = x_0.astype(jnp.float32)
    n_layers = len(params["layers"])
    c = x_0.shape[1]
    out = None
    for li, lp in enumerate(params["layers"]):
        # fc in plain jnp: XLA fuses it with the topology glue below.
        x_fc = x @ lp["fc_w"] + lp["fc_b"]
        # dynamic topology from the fc-transformed features (as in topomodelx)
        inc_local = knn_incidence(x_fc, K_NEIGHBOURS)          # [N, N]
        inc_global = kmeans_incidence(x_fc, K_CENTROIDS)       # [N, k_centroids]
        incidence = jnp.concatenate([inc_local, inc_global], axis=1)  # [N, N + k]
        # Message passing consumes x_fc (matches DHGCNLayer.forward).
        if li == n_layers - 1:
            # last layer: head (mean pool + Linear(C, 1)) fused into the kernel
            out = pallas_dhgcn_last_layer(
                x_fc, incidence, lp["w_0_to_1"], lp["w_1_to_0"],
                params["lin_w"], params["lin_b"])
        else:
            # kernel output is lane-padded [N, 128]; slice back to C outside.
            x = pallas_dhgcn_layer(x_fc, incidence,
                                   lp["w_0_to_1"], lp["w_1_to_0"])[:, :c]
    return out[0, 0]


if __name__ == "__main__":
    key = jax.random.PRNGKey(0)
    k_x, k_p = jax.random.split(key)

    n_nodes, channels_node = 8, 32
    x_0 = jax.random.normal(k_x, (n_nodes, channels_node), jnp.float32)
    params = init_dhgcn_params(k_p, channels_node, n_layers=2)

    fwd = jax.jit(functools.partial(dhgcn_forward, params))
    out = fwd(x_0)
    out = jax.block_until_ready(out)

    assert out.shape == (), f"expected scalar output, got {out.shape}"
    assert jnp.isfinite(out), "non-finite output"
    print("KERNEL_OK")
</pallas_src>

<mosaic_0001>
module attributes {stable_mosaic.version = 11 : i64} {
  func.func @_dhgcn_layer_kernel(%arg0: memref<8x128xf32, #tpu.memory_space<vmem>>, %arg1: memref<8x128xf32, #tpu.memory_space<vmem>>, %arg2: memref<128x8xf32, #tpu.memory_space<vmem>>, %arg3: memref<128x128xf32, #tpu.memory_space<vmem>>, %arg4: memref<128x128xf32, #tpu.memory_space<vmem>>, %arg5: memref<8x128xf32, #tpu.memory_space<vmem>>) attributes {dimension_semantics = [], scalar_prefetch = 0 : i64, scratch_operands = 0 : i64, tpu.core_type = #tpu.core_type<tc>} {
    %c0 = arith.constant 0 : index
    %c0_0 = arith.constant 0 : index
    %0 = vector.load %arg0[%c0, %c0_0] : memref<8x128xf32, #tpu.memory_space<vmem>>, vector<8x128xf32>
    %c0_1 = arith.constant 0 : index
    %c0_2 = arith.constant 0 : index
    %1 = vector.load %arg3[%c0_1, %c0_2] : memref<128x128xf32, #tpu.memory_space<vmem>>, vector<128x128xf32>
    %cst = arith.constant dense<0.000000e+00> : vector<8x128xf32>
    %2 = tpu.matmul %0, %1, %cst {dimension_numbers = #tpu.dot_dimension_numbers<[1], [0], [0], [1], [0, 0, 1, 1], [], []>} : vector<8x128xf32>, vector<128x128xf32>, vector<8x128xf32> -> vector<8x128xf32>
    %c0_3 = arith.constant 0 : index
    %c0_4 = arith.constant 0 : index
    %3 = vector.load %arg2[%c0_3, %c0_4] : memref<128x8xf32, #tpu.memory_space<vmem>>, vector<128x8xf32>
    %cst_5 = arith.constant dense<0.000000e+00> : vector<128x128xf32>
    %4 = tpu.matmul %3, %2, %cst_5 {dimension_numbers = #tpu.dot_dimension_numbers<[1], [0], [0], [1], [0, 0, 1, 1], [], []>} : vector<128x8xf32>, vector<8x128xf32>, vector<128x128xf32> -> vector<128x128xf32>
    %c0_6 = arith.constant 0 : index
    %c0_7 = arith.constant 0 : index
    %5 = vector.load %arg4[%c0_6, %c0_7] : memref<128x128xf32, #tpu.memory_space<vmem>>, vector<128x128xf32>
    %cst_8 = arith.constant dense<0.000000e+00> : vector<128x128xf32>
    %6 = tpu.matmul %4, %5, %cst_8 {dimension_numbers = #tpu.dot_dimension_numbers<[1], [0], [0], [1], [0, 0, 1, 1], [], []>} : vector<128x128xf32>, vector<128x128xf32>, vector<128x128xf32> -> vector<128x128xf32>
    %c0_9 = arith.constant 0 : index
    %c0_10 = arith.constant 0 : index
    %7 = vector.load %arg1[%c0_9, %c0_10] : memref<8x128xf32, #tpu.memory_space<vmem>>, vector<8x128xf32>
    %cst_11 = arith.constant dense<0.000000e+00> : vector<8x128xf32>
    %8 = tpu.matmul %7, %6, %cst_11 {dimension_numbers = #tpu.dot_dimension_numbers<[1], [0], [0], [1], [0, 0, 1, 1], [], []>} : vector<8x128xf32>, vector<128x128xf32>, vector<8x128xf32> -> vector<8x128xf32>
    %9 = arith.negf %8 : vector<8x128xf32>
    %10 = math.exp %9 : vector<8x128xf32>
    %cst_12 = arith.constant 1.000000e+00 : f32
    %11 = vector.broadcast %cst_12 : f32 to vector<8x128xf32>
    %12 = arith.addf %11, %10 : vector<8x128xf32>
    %13 = arith.divf %11, %12 : vector<8x128xf32>
    %c0_13 = arith.constant 0 : index
    %c0_14 = arith.constant 0 : index
    %14 = vector.load %arg5[%c0_13, %c0_14] : memref<8x128xf32, #tpu.memory_space<vmem>>, vector<8x128xf32>
    tpu.vector_store %arg5[%c0_13, %c0_14], %13 {strides = array<i32>} : memref<8x128xf32, #tpu.memory_space<vmem>>, vector<8x128xf32>,
    return
  }
}

module attributes {stable_mosaic.version = 11 : i64} {
  func.func @_dhgcn_last_layer_kernel(%arg0: memref<8x128xf32, #tpu.memory_space<vmem>>, %arg1: memref<8x128xf32, #tpu.memory_space<vmem>>, %arg2: memref<128x8xf32, #tpu.memory_space<vmem>>, %arg3: memref<128x128xf32, #tpu.memory_space<vmem>>, %arg4: memref<128x128xf32, #tpu.memory_space<vmem>>, %arg5: memref<128x1xf32, #tpu.memory_space<vmem>>, %arg6: memref<1x1xf32, #tpu.memory_space<vmem>>, %arg7: memref<1x1xf32, #tpu.memory_space<vmem>>) attributes {dimension_semantics = [], scalar_prefetch = 0 : i64, scratch_operands = 0 : i64, tpu.core_type = #tpu.core_type<tc>} {
    %c0 = arith.constant 0 : index
    %c0_0 = arith.constant 0 : index
    %0 = vector.load %arg0[%c0, %c0_0] : memref<8x128xf32, #tpu.memory_space<vmem>>, vector<8x128xf32>
    %c0_1 = arith.constant 0 : index
    %c0_2 = arith.constant 0 : index
    %1 = vector.load %arg3[%c0_1, %c0_2] : memref<128x128xf32, #tpu.memory_space<vmem>>, vector<128x128xf32>
    %cst = arith.constant dense<0.000000e+00> : vector<8x128xf32>
    %2 = tpu.matmul %0, %1, %cst {dimension_numbers = #tpu.dot_dimension_numbers<[1], [0], [0], [1], [0, 0, 1, 1], [], []>} : vector<8x128xf32>, vector<128x128xf32>, vector<8x128xf32> -> vector<8x128xf32>
    %c0_3 = arith.constant 0 : index
    %c0_4 = arith.constant 0 : index
    %3 = vector.load %arg2[%c0_3, %c0_4] : memref<128x8xf32, #tpu.memory_space<vmem>>, vector<128x8xf32>
    %cst_5 = arith.constant dense<0.000000e+00> : vector<128x128xf32>
    %4 = tpu.matmul %3, %2, %cst_5 {dimension_numbers = #tpu.dot_dimension_numbers<[1], [0], [0], [1], [0, 0, 1, 1], [], []>} : vector<128x8xf32>, vector<8x128xf32>, vector<128x128xf32> -> vector<128x128xf32>
    %c0_6 = arith.constant 0 : index
    %c0_7 = arith.constant 0 : index
    %5 = vector.load %arg4[%c0_6, %c0_7] : memref<128x128xf32, #tpu.memory_space<vmem>>, vector<128x128xf32>
    %cst_8 = arith.constant dense<0.000000e+00> : vector<128x128xf32>
    %6 = tpu.matmul %4, %5, %cst_8 {dimension_numbers = #tpu.dot_dimension_numbers<[1], [0], [0], [1], [0, 0, 1, 1], [], []>} : vector<128x128xf32>, vector<128x128xf32>, vector<128x128xf32> -> vector<128x128xf32>
    %c0_9 = arith.constant 0 : index
    %c0_10 = arith.constant 0 : index
    %7 = vector.load %arg1[%c0_9, %c0_10] : memref<8x128xf32, #tpu.memory_space<vmem>>, vector<8x128xf32>
    %cst_11 = arith.constant dense<0.000000e+00> : vector<8x128xf32>
    %8 = tpu.matmul %7, %6, %cst_11 {dimension_numbers = #tpu.dot_dimension_numbers<[1], [0], [0], [1], [0, 0, 1, 1], [], []>} : vector<8x128xf32>, vector<128x128xf32>, vector<8x128xf32> -> vector<8x128xf32>
    %9 = arith.negf %8 : vector<8x128xf32>
    %10 = math.exp %9 : vector<8x128xf32>
    %cst_12 = arith.constant 1.000000e+00 : f32
    %11 = vector.broadcast %cst_12 : f32 to vector<8x128xf32>
    %12 = arith.addf %11, %10 : vector<8x128xf32>
    %13 = arith.divf %11, %12 : vector<8x128xf32>
    %cst_13 = arith.constant 1.000000e+00 : f32
    %14 = vector.broadcast %cst_13 : f32 to vector<1x8xf32>
    %cst_14 = arith.constant dense<0.000000e+00> : vector<1x128xf32>
    %15 = tpu.matmul %14, %13, %cst_14 {dimension_numbers = #tpu.dot_dimension_numbers<[1], [0], [0], [1], [0, 0, 1, 1], [], []>} : vector<1x8xf32>, vector<8x128xf32>, vector<1x128xf32> -> vector<1x128xf32>
    %c0_15 = arith.constant 0 : index
    %c0_16 = arith.constant 0 : index
    %16 = vector.load %arg5[%c0_15, %c0_16] : memref<128x1xf32, #tpu.memory_space<vmem>>, vector<128x1xf32>
    %cst_17 = arith.constant dense<0.000000e+00> : vector<1x1xf32>
    %17 = tpu.matmul %15, %16, %cst_17 {dimension_numbers = #tpu.dot_dimension_numbers<[1], [0], [0], [1], [0, 0, 1, 1], [], []>} : vector<1x128xf32>, vector<128x1xf32>, vector<1x1xf32> -> vector<1x1xf32>
    %c0_18 = arith.constant 0 : index
    %c0_19 = arith.constant 0 : index
    %18 = vector.load %arg6[%c0_18, %c0_19] : memref<1x1xf32, #tpu.memory_space<vmem>>, vector<1x1xf32>
    %19 = arith.addf %17, %18 : vector<1x1xf32>
    %c0_20 = arith.constant 0 : index
    %c0_21 = arith.constant 0 : index
    %20 = vector.load %arg7[%c0_20, %c0_21] : memref<1x1xf32, #tpu.memory_space<vmem>>, vector<1x1xf32>
    tpu.vector_store %arg7[%c0_20, %c0_21], %19 {strides = array<i32>} : memref<1x1xf32, #tpu.memory_space<vmem>>, vector<1x1xf32>,
    return
  }
}

</mosaic_0001>

<llo_original>
// kernel: dhgcn_forward.2
$region0: #{dhgcn_forward.2}
  #allocation0 [shape = 'u32[]', space=smem, size = 0x4, offset = 0x4, fixed_abs, tag = 'smem constant byte address 0x4 - core index']
  #allocation1 [shape = 'u32[72,128]{1,0:T(1,128)}', space=vmem, size = 0x9000, scoped, tag = 'internal scratch']
  %s0 = inlined_call_operand.vmem [shape: f32[8,128], index: 0, kind: input, shape index: {}]
  %s1 = inlined_call_operand.vmem [shape: f32[8,128], index: 1, kind: input, shape index: {}]
  %s2 = inlined_call_operand.vmem [shape: f32[128,8], index: 2, kind: input, shape index: {}]
  %s3 = inlined_call_operand.vmem [shape: f32[128,128], index: 3, kind: input, shape index: {}]
  %s4 = inlined_call_operand.vmem [shape: f32[128,128], index: 4, kind: input, shape index: {}]
  %s5 = inlined_call_operand.vmem [shape: f32[8,128], index: 5, kind: output, shape index: {}]
  %s6 = sld [smem:[#allocation0]]
  $region30: #{dhgcn_forward.2} parent=0
    _
  %s8 = ssub.s32 1, %s6
  %s9 = scalar_select 0, %s8, %s6
  // Predicated region
  $region2: #{dhgcn_forward.2} parent=0 // pred_check
    _
  $region3: #{dhgcn_forward.2} parent=0 // pred_check_branch
    %11 = sbr.rel (0) target = $region5
  $region4: #{dhgcn_forward.2} parent=0 // pred_region
    _
  $region5: #{dhgcn_forward.2} parent=0 // pred_fallthru
    _
  // Predicated region
  $region6: #{dhgcn_forward.2} parent=0 // pred_check
    _
  $region7: #{dhgcn_forward.2} parent=0 // pred_check_branch
    %13 = sbr.rel (0) target = $region9
  $region8: #{dhgcn_forward.2} parent=0 // pred_region
    _
  $region9: #{dhgcn_forward.2} parent=0 // pred_fallthru
    _
  // Predicated region
  $region10: #{dhgcn_forward.2} parent=0 // pred_check
    _
  $region11: #{dhgcn_forward.2} parent=0 // pred_check_branch
    %15 = sbr.rel (0) target = $region13
  $region12: #{dhgcn_forward.2} parent=0 // pred_region
    _
  $region13: #{dhgcn_forward.2} parent=0 // pred_fallthru
    _
  // Predicated region
  $region14: #{dhgcn_forward.2} parent=0 // pred_check
    _
  $region15: #{dhgcn_forward.2} parent=0 // pred_check_branch
    %17 = sbr.rel (0) target = $region17
  $region16: #{dhgcn_forward.2} parent=0 // pred_region
    _
  $region17: #{dhgcn_forward.2} parent=0 // pred_fallthru
    _
  // Predicated region
  $region18: #{dhgcn_forward.2} parent=0 // pred_check
    _
  $region19: #{dhgcn_forward.2} parent=0 // pred_check_branch
    %19 = sbr.rel (0) target = $region21
  $region20: #{dhgcn_forward.2} parent=0 // pred_region
    _
  $region21: #{dhgcn_forward.2} parent=0 // pred_fallthru
    _
  %v20 = vld [vmem:[%s0] sm:$0xff]
  %v21 = vld [vmem:[%s3] sm:$0xff]
  %v22 = vld [vmem:[%s3 + $0x8] sm:$0xff]
  %v23 = vld [vmem:[%s3 + $0x10] sm:$0xff]
  %v24 = vld [vmem:[%s3 + $0x18] sm:$0xff]
  %v25 = vld [vmem:[%s3 + $0x20] sm:$0xff]
  %v26 = vld [vmem:[%s3 + $0x28] sm:$0xff]
  %v27 = vld [vmem:[%s3 + $0x30] sm:$0xff]
  %v28 = vld [vmem:[%s3 + $0x38] sm:$0xff]
  %v29 = vld [vmem:[%s3 + $0x40] sm:$0xff]
  %v30 = vld [vmem:[%s3 + $0x48] sm:$0xff]
  %v31 = vld [vmem:[%s3 + $0x50] sm:$0xff]
  %v32 = vld [vmem:[%s3 + $0x58] sm:$0xff]
  %v33 = vld [vmem:[%s3 + $0x60] sm:$0xff]
  %v34 = vld [vmem:[%s3 + $0x68] sm:$0xff]
  %v35 = vld [vmem:[%s3 + $0x70] sm:$0xff]
  %v36 = vld [vmem:[%s3 + $0x78] sm:$0xff]
  %37 = vmatpush.msra.mxu0 %v36
  %38 = vmatpush.msra.mxu0 %v35
  %39 = vmatpush.msra.mxu0 %v34
  %40 = vmatpush.msra.mxu0 %v33
  %41 = vmatpush.msra.mxu0 %v32
  %42 = vmatpush.msra.mxu0 %v31
  %43 = vmatpush.msra.mxu0 %v30
  %44 = vmatpush.msra.mxu0 %v29
  %45 = vmatpush.msra.mxu0 %v28
  %46 = vmatpush.msra.mxu0 %v27
  %47 = vmatpush.msra.mxu0 %v26
  %48 = vmatpush.msra.mxu0 %v25
  %49 = vmatpush.msra.mxu0 %v24
  %50 = vmatpush.msra.mxu0 %v23
  %51 = vmatpush.msra.mxu0 %v22
  %52 = vmatpush.msra.mxu0 %v21
  %53 = vmatmul.f32.gmra.mxu0 %v20
  %v54 = vpop.f32.mrf.mxu0
  %v55 = vadd.f32 0.0, %v54
  %56 = vdwg.mxu0
  %v57 = vld [vmem:[%s2] sm:$0xff]
  %v58 = vld [vmem:[%s2 + $0x8] sm:$0xff]
  %v59 = vld [vmem:[%s2 + $0x10] sm:$0xff]
  %v60 = vld [vmem:[%s2 + $0x18] sm:$0xff]
  %v61 = vld [vmem:[%s2 + $0x20] sm:$0xff]
  %v62 = vld [vmem:[%s2 + $0x28] sm:$0xff]
  %v63 = vld [vmem:[%s2 + $0x30] sm:$0xff]
  %v64 = vld [vmem:[%s2 + $0x38] sm:$0xff]
  %v65 = vld [vmem:[%s2 + $0x40] sm:$0xff]
  %v66 = vld [vmem:[%s2 + $0x48] sm:$0xff]
  %v67 = vld [vmem:[%s2 + $0x50] sm:$0xff]
  %v68 = vld [vmem:[%s2 + $0x58] sm:$0xff]
  %v69 = vld [vmem:[%s2 + $0x60] sm:$0xff]
  %v70 = vld [vmem:[%s2 + $0x68] sm:$0xff]
  %v71 = vld [vmem:[%s2 + $0x70] sm:$0xff]
  %v72 = vld [vmem:[%s2 + $0x78] sm:$0xff]
  %vm73 = vcmask 64512
  %v75 = vsel %vm73, %v57, 0
  %v78 = vsel %vm73, %v58, 0
  %v81 = vsel %vm73, %v59, 0
  %v84 = vsel %vm73, %v60, 0
  %v87 = vsel %vm73, %v61, 0
  %v90 = vsel %vm73, %v62, 0
  %v93 = vsel %vm73, %v63, 0
  %v96 = vsel %vm73, %v64, 0
  %v99 = vsel %vm73, %v65, 0
  %v102 = vsel %vm73, %v66, 0
  %v105 = vsel %vm73, %v67, 0
  %v108 = vsel %vm73, %v68, 0
  %v111 = vsel %vm73, %v69, 0
  %v114 = vsel %vm73, %v70, 0
  %v117 = vsel %vm73, %v71, 0
  %v120 = vsel %vm73, %v72, 0
  %122 = vmatpush.msra.mxu0 0.0
  %123 = vmatpush.msra.mxu0 0.0
  %124 = vmatpush.msra.mxu0 0.0
  %125 = vmatpush.msra.mxu0 0.0
  %126 = vmatpush.msra.mxu0 0.0
  %127 = vmatpush.msra.mxu0 0.0
  %128 = vmatpush.msra.mxu0 0.0
  %129 = vmatpush.msra.mxu0 0.0
  %130 = vmatpush.msra.mxu0 0.0
  %131 = vmatpush.msra.mxu0 0.0
  %132 = vmatpush.msra.mxu0 0.0
  %133 = vmatpush.msra.mxu0 0.0
  %134 = vmatpush.msra.mxu0 0.0
  %135 = vmatpush.msra.mxu0 0.0
  %136 = vmatpush.msra.mxu0 0.0
  %137 = vmatpush.msra.mxu0 %v55
  %138 = vmatmul.f32.gmra.mxu0 %v75
  %v139 = vpop.f32.mrf.mxu0
  %v140 = vadd.f32 0.0, %v139
  %141 = vmatmul.f32.gmra.mxu0 %v78
  %v142 = vpop.f32.mrf.mxu0
  %v143 = vadd.f32 0.0, %v142
  %144 = vmatmul.f32.gmra.mxu0 %v81
  %v145 = vpop.f32.mrf.mxu0
  %v146 = vadd.f32 0.0, %v145
  %147 = vmatmul.f32.gmra.mxu0 %v84
  %v148 = vpop.f32.mrf.mxu0
  %v149 = vadd.f32 0.0, %v148
  %150 = vmatmul.f32.gmra.mxu0 %v87
  %v151 = vpop.f32.mrf.mxu0
  %v152 = vadd.f32 0.0, %v151
  %153 = vmatmul.f32.gmra.mxu0 %v90
  %v154 = vpop.f32.mrf.mxu0
  %v155 = vadd.f32 0.0, %v154
  %156 = vmatmul.f32.gmra.mxu0 %v93
  %v157 = vpop.f32.mrf.mxu0
  %v158 = vadd.f32 0.0, %v157
  %159 = vmatmul.f32.gmra.mxu0 %v96
  %v160 = vpop.f32.mrf.mxu0
  %v161 = vadd.f32 0.0, %v160
  %162 = vmatmul.f32.gmra.mxu0 %v99
  %v163 = vpop.f32.mrf.mxu0
  %v164 = vadd.f32 0.0, %v163
  %165 = vmatmul.f32.gmra.mxu0 %v102
  %v166 = vpop.f32.mrf.mxu0
  %v167 = vadd.f32 0.0, %v166
  %168 = vmatmul.f32.gmra.mxu0 %v105
  %v169 = vpop.f32.mrf.mxu0
  %v170 = vadd.f32 0.0, %v169
  %171 = vmatmul.f32.gmra.mxu0 %v108
  %v172 = vpop.f32.mrf.mxu0
  %v173 = vadd.f32 0.0, %v172
  %174 = vmatmul.f32.gmra.mxu0 %v111
  %v175 = vpop.f32.mrf.mxu0
  %v176 = vadd.f32 0.0, %v175
  %177 = vmatmul.f32.gmra.mxu0 %v114
  %v178 = vpop.f32.mrf.mxu0
  %v179 = vadd.f32 0.0, %v178
  %180 = vmatmul.f32.gmra.mxu0 %v117
  %v181 = vpop.f32.mrf.mxu0
  %v182 = vadd.f32 0.0, %v181
  %183 = vmatmul.f32.gmra.mxu0 %v120
  %v184 = vpop.f32.mrf.mxu0
  %v185 = vadd.f32 0.0, %v184
  %186 = vdwg.mxu0
  %v187 = vld [vmem:[%s4] sm:$0xff]
  %v188 = vld [vmem:[%s4 + $0x8] sm:$0xff]
  %v189 = vld [vmem:[%s4 + $0x10] sm:$0xff]
  %v190 = vld [vmem:[%s4 + $0x18] sm:$0xff]
  %v191 = vld [vmem:[%s4 + $0x20] sm:$0xff]
  %v192 = vld [vmem:[%s4 + $0x28] sm:$0xff]
  %v193 = vld [vmem:[%s4 + $0x30] sm:$0xff]
  %v194 = vld [vmem:[%s4 + $0x38] sm:$0xff]
  %v195 = vld [vmem:[%s4 + $0x40] sm:$0xff]
  %v196 = vld [vmem:[%s4 + $0x48] sm:$0xff]
  %v197 = vld [vmem:[%s4 + $0x50] sm:$0xff]
  %v198 = vld [vmem:[%s4 + $0x58] sm:$0xff]
  %v199 = vld [vmem:[%s4 + $0x60] sm:$0xff]
  %v200 = vld [vmem:[%s4 + $0x68] sm:$0xff]
  %v201 = vld [vmem:[%s4 + $0x70] sm:$0xff]
  %v202 = vld [vmem:[%s4 + $0x78] sm:$0xff]
  %203 = vmatpush.msra.mxu0 %v202
  %204 = vmatpush.msra.mxu0 %v201
  %205 = vmatpush.msra.mxu0 %v200
  %206 = vmatpush.msra.mxu0 %v199
  %207 = vmatpush.msra.mxu0 %v198
  %208 = vmatpush.msra.mxu0 %v197
  %209 = vmatpush.msra.mxu0 %v196
  %210 = vmatpush.msra.mxu0 %v195
  %211 = vmatpush.msra.mxu0 %v194
  %212 = vmatpush.msra.mxu0 %v193
  %213 = vmatpush.msra.mxu0 %v192
  %214 = vmatpush.msra.mxu0 %v191
  %215 = vmatpush.msra.mxu0 %v190
  %216 = vmatpush.msra.mxu0 %v189
  %217 = vmatpush.msra.mxu0 %v188
  %218 = vmatpush.msra.mxu0 %v187
  %219 = vmatmul.f32.gmra.mxu0 %v140
  %v220 = vpop.f32.mrf.mxu0
  %v221 = vadd.f32 0.0, %v220
  %222 = vmatmul.f32.gmra.mxu0 %v143
  %v223 = vpop.f32.mrf.mxu0
  %v224 = vadd.f32 0.0, %v223
  %225 = vmatmul.f32.gmra.mxu0 %v146
  %v226 = vpop.f32.mrf.mxu0
  %v227 = vadd.f32 0.0, %v226
  %228 = vmatmul.f32.gmra.mxu0 %v149
  %v229 = vpop.f32.mrf.mxu0
  %v230 = vadd.f32 0.0, %v229
  %231 = vmatmul.f32.gmra.mxu0 %v152
  %v232 = vpop.f32.mrf.mxu0
  %v233 = vadd.f32 0.0, %v232
  %234 = vmatmul.f32.gmra.mxu0 %v155
  %v235 = vpop.f32.mrf.mxu0
  %v236 = vadd.f32 0.0, %v235
  %237 = vmatmul.f32.gmra.mxu0 %v158
  %v238 = vpop.f32.mrf.mxu0
  %v239 = vadd.f32 0.0, %v238
  %240 = vmatmul.f32.gmra.mxu0 %v161
  %v241 = vpop.f32.mrf.mxu0
  %v242 = vadd.f32 0.0, %v241
  %243 = vmatmul.f32.gmra.mxu0 %v164
  %v244 = vpop.f32.mrf.mxu0
  %v245 = vadd.f32 0.0, %v244
  %246 = vmatmul.f32.gmra.mxu0 %v167
  %v247 = vpop.f32.mrf.mxu0
  %v248 = vadd.f32 0.0, %v247
  %249 = vmatmul.f32.gmra.mxu0 %v170
  %v250 = vpop.f32.mrf.mxu0
  %v251 = vadd.f32 0.0, %v250
  %252 = vmatmul.f32.gmra.mxu0 %v173
  %v253 = vpop.f32.mrf.mxu0
  %v254 = vadd.f32 0.0, %v253
  %255 = vmatmul.f32.gmra.mxu0 %v176
  %v256 = vpop.f32.mrf.mxu0
  %v257 = vadd.f32 0.0, %v256
  %258 = vmatmul.f32.gmra.mxu0 %v179
  %v259 = vpop.f32.mrf.mxu0
  %v260 = vadd.f32 0.0, %v259
  %261 = vmatmul.f32.gmra.mxu0 %v182
  %v262 = vpop.f32.mrf.mxu0
  %v263 = vadd.f32 0.0, %v262
  %264 = vmatmul.f32.gmra.mxu0 %v185
  %v265 = vpop.f32.mrf.mxu0
  %v266 = vadd.f32 0.0, %v265
  %267 = vdwg.mxu0
  %v268 = vld [vmem:[%s1] sm:$0xff]
  %269 = vmatpush.msra.mxu0 %v266
  %270 = vmatpush.msra.mxu0 %v263
  %271 = vmatpush.msra.mxu0 %v260
  %272 = vmatpush.msra.mxu0 %v257
  %273 = vmatpush.msra.mxu0 %v254
  %274 = vmatpush.msra.mxu0 %v251
  %275 = vmatpush.msra.mxu0 %v248
  %276 = vmatpush.msra.mxu0 %v245
  %277 = vmatpush.msra.mxu0 %v242
  %278 = vmatpush.msra.mxu0 %v239
  %279 = vmatpush.msra.mxu0 %v236
  %280 = vmatpush.msra.mxu0 %v233
  %281 = vmatpush.msra.mxu0 %v230
  %282 = vmatpush.msra.mxu0 %v227
  %283 = vmatpush.msra.mxu0 %v224
  %284 = vmatpush.msra.mxu0 %v221
  %285 = vmatmul.f32.gmra.mxu0 %v268
  %v286 = vpop.f32.mrf.mxu0
  %v287 = vadd.f32 0.0, %v286
  %288 = vdwg.mxu0
  %v289 = vxor.u32 %v287, 2147483648
  %v290 = vmul.f32 %v289, 1.442695
  %v291 = vpow.pop %v290
  %v292 = vadd.f32 %v291, 1.0
  %v293 = vrcp.pop %v292
  %v294 = vmul.f32 %v292, %v293
  %v295 = vsub.f32 1.0, %v294
  %v296 = vmul.f32 %v293, %v295
  %v297 = vadd.f32 %v293, %v296
  %vm298 = vweird.f32 %v292
  %vm299 = vweird.f32 %v293
  %vm300 = vmor %vm298, %vm299
  %v301 = vsel %vm300, %v293, %v297
  %v302 = vand.u32 2147483647, %v292
  %vm303 = vcmp.eq.f32.partialorder %v302, 8.507059e+37
  %v304 = vand.u32 %v292, 2147483648
  %v305 = vor.u32 1.1754944e-38, %v304
  %v306 = vsel %vm303, %v305, %v301
  %v307 = vmul.f32 1.0, %v306
  %308 = vst [vmem:[%s5] sm:$0xff] %v307
  // Predicated region
  $region22: #{dhgcn_forward.2} parent=0 // pred_check
    _
  $region23: #{dhgcn_forward.2} parent=0 // pred_check_branch
    %310 = sbr.rel (0) target = $region25
  $region24: #{dhgcn_forward.2} parent=0 // pred_region
    _
  $region25: #{dhgcn_forward.2} parent=0 // pred_fallthru
    _
  // Predicated region
  $region26: #{dhgcn_forward.2} parent=0 // pred_check
    _
  $region27: #{dhgcn_forward.2} parent=0 // pred_check_branch
    %312 = sbr.rel (0) target = $region29
  $region28: #{dhgcn_forward.2} parent=0 // pred_region
    _
  $region29: #{dhgcn_forward.2} parent=0 // pred_fallthru
    _

// kernel: dhgcn_forward.3
$region0: #{dhgcn_forward.3}
  #allocation0 [shape = 'u32[]', space=smem, size = 0x4, offset = 0x4, fixed_abs, tag = 'smem constant byte address 0x4 - core index']
  #allocation1 [shape = 'u32[72,128]{1,0:T(1,128)}', space=vmem, size = 0x9000, scoped, tag = 'internal scratch']
  #allocation2 [shape = 'f32[1,1]{1,0:T(1,128)S(1)}', space=vmem, size = 0x200, scoped, tag = 'scoped memory for dhgcn_forward.3']
  %s0 = inlined_call_operand.vmem [shape: f32[8,128], index: 0, kind: input, shape index: {}]
  %s1 = inlined_call_operand.vmem [shape: f32[8,128], index: 1, kind: input, shape index: {}]
  %s2 = inlined_call_operand.vmem [shape: f32[128,8], index: 2, kind: input, shape index: {}]
  %s3 = inlined_call_operand.vmem [shape: f32[128,128], index: 3, kind: input, shape index: {}]
  %s4 = inlined_call_operand.vmem [shape: f32[128,128], index: 4, kind: input, shape index: {}]
  %s5 = inlined_call_operand.vmem [shape: f32[128,1], index: 5, kind: input, shape index: {}]
  %s6 = inlined_call_operand.<no memory space> [shape: f32[1,1], index: 6, kind: input, shape index: {}]
  %s7 = inlined_call_operand.hbm [shape: f32[1,1], index: 7, kind: output, shape index: {}]
  %s8 = sld [smem:[#allocation0]]
  $region38: #{dhgcn_forward.3} parent=0
    _
  %s10 = ssub.s32 1, %s8
  %s11 = scalar_select 0, %s10, %s8
  %v12 = vstv %s6
  %13 = vst [vmem:[#allocation2] sm:$0x1] %v12
  $region1: #{dhgcn_forward.3} parent=0
    #allocation3 [shape = 'u8[512]{0}', space=vmem, size = 0x400, scoped, tag = 'output window, operand 0, single buffered']
    #allocation4 [shape = 's32[1]{0}', space=sflag, size = 0x4, scoped, tag = 'scoped memory for dhgcn_forward.3']
    %14 = vsyncpa [#allocation4], 0
    // Predicated region
    $region2: #{dhgcn_forward.3} parent=1 // pred_check
      _
    $region3: #{dhgcn_forward.3} parent=1 // pred_check_branch
      %16 = sbr.rel (0) target = $region5
    $region4: #{dhgcn_forward.3} parent=1 // pred_region
      _
    $region5: #{dhgcn_forward.3} parent=1 // pred_fallthru
      _
    // Predicated region
    $region6: #{dhgcn_forward.3} parent=1 // pred_check
      _
    $region7: #{dhgcn_forward.3} parent=1 // pred_check_branch
      %18 = sbr.rel (0) target = $region9
    $region8: #{dhgcn_forward.3} parent=1 // pred_region
      _
    $region9: #{dhgcn_forward.3} parent=1 // pred_fallthru
      _
    // Predicated region
    $region10: #{dhgcn_forward.3} parent=1 // pred_check
      _
    $region11: #{dhgcn_forward.3} parent=1 // pred_check_branch
      %20 = sbr.rel (0) target = $region13
    $region12: #{dhgcn_forward.3} parent=1 // pred_region
      _
    $region13: #{dhgcn_forward.3} parent=1 // pred_fallthru
      _
    // Predicated region
    $region14: #{dhgcn_forward.3} parent=1 // pred_check
      _
    $region15: #{dhgcn_forward.3} parent=1 // pred_check_branch
      %22 = sbr.rel (0) target = $region17
    $region16: #{dhgcn_forward.3} parent=1 // pred_region
      _
    $region17: #{dhgcn_forward.3} parent=1 // pred_fallthru
      _
    // Predicated region
    $region18: #{dhgcn_forward.3} parent=1 // pred_check
      _
    $region19: #{dhgcn_forward.3} parent=1 // pred_check_branch
      %24 = sbr.rel (0) target = $region21
    $region20: #{dhgcn_forward.3} parent=1 // pred_region
      _
    $region21: #{dhgcn_forward.3} parent=1 // pred_fallthru
      _
    // Predicated region
    $region22: #{dhgcn_forward.3} parent=1 // pred_check
      _
    $region23: #{dhgcn_forward.3} parent=1 // pred_check_branch
      %26 = sbr.rel (0) target = $region25
    $region24: #{dhgcn_forward.3} parent=1 // pred_region
      _
    $region25: #{dhgcn_forward.3} parent=1 // pred_fallthru
      _
    // Predicated region
    $region26: #{dhgcn_forward.3} parent=1 // pred_check
      _
    $region27: #{dhgcn_forward.3} parent=1 // pred_check_branch
      %28 = sbr.rel (0) target = $region29
    $region28: #{dhgcn_forward.3} parent=1 // pred_region
      _
    $region29: #{dhgcn_forward.3} parent=1 // pred_fallthru
      _
    %v29 = vld [vmem:[%s0] sm:$0xff]
    %v30 = vld [vmem:[%s3] sm:$0xff]
    %v31 = vld [vmem:[%s3 + $0x8] sm:$0xff]
    %v32 = vld [vmem:[%s3 + $0x10] sm:$0xff]
    %v33 = vld [vmem:[%s3 + $0x18] sm:$0xff]
    %v34 = vld [vmem:[%s3 + $0x20] sm:$0xff]
    %v35 = vld [vmem:[%s3 + $0x28] sm:$0xff]
    %v36 = vld [vmem:[%s3 + $0x30] sm:$0xff]
    %v37 = vld [vmem:[%s3 + $0x38] sm:$0xff]
    %v38 = vld [vmem:[%s3 + $0x40] sm:$0xff]
    %v39 = vld [vmem:[%s3 + $0x48] sm:$0xff]
    %v40 = vld [vmem:[%s3 + $0x50] sm:$0xff]
    %v41 = vld [vmem:[%s3 + $0x58] sm:$0xff]
    %v42 = vld [vmem:[%s3 + $0x60] sm:$0xff]
    %v43 = vld [vmem:[%s3 + $0x68] sm:$0xff]
    %v44 = vld [vmem:[%s3 + $0x70] sm:$0xff]
    %v45 = vld [vmem:[%s3 + $0x78] sm:$0xff]
    %46 = vmatpush.msra.mxu0 %v45
    %47 = vmatpush.msra.mxu0 %v44
    %48 = vmatpush.msra.mxu0 %v43
    %49 = vmatpush.msra.mxu0 %v42
    %50 = vmatpush.msra.mxu0 %v41
    %51 = vmatpush.msra.mxu0 %v40
    %52 = vmatpush.msra.mxu0 %v39
    %53 = vmatpush.msra.mxu0 %v38
    %54 = vmatpush.msra.mxu0 %v37
    %55 = vmatpush.msra.mxu0 %v36
    %56 = vmatpush.msra.mxu0 %v35
    %57 = vmatpush.msra.mxu0 %v34
    %58 = vmatpush.msra.mxu0 %v33
    %59 = vmatpush.msra.mxu0 %v32
    %60 = vmatpush.msra.mxu0 %v31
    %61 = vmatpush.msra.mxu0 %v30
    %62 = vmatmul.f32.gmra.mxu0 %v29
    %v63 = vpop.f32.mrf.mxu0
    %v64 = vadd.f32 0.0, %v63
    %65 = vdwg.mxu0
    %v66 = vld [vmem:[%s2] sm:$0xff]
    %v67 = vld [vmem:[%s2 + $0x8] sm:$0xff]
    %v68 = vld [vmem:[%s2 + $0x10] sm:$0xff]
    %v69 = vld [vmem:[%s2 + $0x18] sm:$0xff]
    %v70 = vld [vmem:[%s2 + $0x20] sm:$0xff]
    %v71 = vld [vmem:[%s2 + $0x28] sm:$0xff]
    %v72 = vld [vmem:[%s2 + $0x30] sm:$0xff]
    %v73 = vld [vmem:[%s2 + $0x38] sm:$0xff]
    %v74 = vld [vmem:[%s2 + $0x40] sm:$0xff]
    %v75 = vld [vmem:[%s2 + $0x48] sm:$0xff]
    %v76 = vld [vmem:[%s2 + $0x50] sm:$0xff]
    %v77 = vld [vmem:[%s2 + $0x58] sm:$0xff]
    %v78 = vld [vmem:[%s2 + $0x60] sm:$0xff]
    %v79 = vld [vmem:[%s2 + $0x68] sm:$0xff]
    %v80 = vld [vmem:[%s2 + $0x70] sm:$0xff]
    %v81 = vld [vmem:[%s2 + $0x78] sm:$0xff]
    %vm82 = vcmask 64512
    %v84 = vsel %vm82, %v66, 0
    %v87 = vsel %vm82, %v67, 0
    %v90 = vsel %vm82, %v68, 0
    %v93 = vsel %vm82, %v69, 0
    %v96 = vsel %vm82, %v70, 0
    %v99 = vsel %vm82, %v71, 0
    %v102 = vsel %vm82, %v72, 0
    %v105 = vsel %vm82, %v73, 0
    %v108 = vsel %vm82, %v74, 0
    %v111 = vsel %vm82, %v75, 0
    %v114 = vsel %vm82, %v76, 0
    %v117 = vsel %vm82, %v77, 0
    %v120 = vsel %vm82, %v78, 0
    %v123 = vsel %vm82, %v79, 0
    %v126 = vsel %vm82, %v80, 0
    %v129 = vsel %vm82, %v81, 0
    %131 = vmatpush.msra.mxu0 0.0
    %132 = vmatpush.msra.mxu0 0.0
    %133 = vmatpush.msra.mxu0 0.0
    %134 = vmatpush.msra.mxu0 0.0
    %135 = vmatpush.msra.mxu0 0.0
    %136 = vmatpush.msra.mxu0 0.0
    %137 = vmatpush.msra.mxu0 0.0
    %138 = vmatpush.msra.mxu0 0.0
    %139 = vmatpush.msra.mxu0 0.0
    %140 = vmatpush.msra.mxu0 0.0
    %141 = vmatpush.msra.mxu0 0.0
    %142 = vmatpush.msra.mxu0 0.0
    %143 = vmatpush.msra.mxu0 0.0
    %144 = vmatpush.msra.mxu0 0.0
    %145 = vmatpush.msra.mxu0 0.0
    %146 = vmatpush.msra.mxu0 %v64
    %147 = vmatmul.f32.gmra.mxu0 %v84
    %v148 = vpop.f32.mrf.mxu0
    %v149 = vadd.f32 0.0, %v148
    %150 = vmatmul.f32.gmra.mxu0 %v87
    %v151 = vpop.f32.mrf.mxu0
    %v152 = vadd.f32 0.0, %v151
    %153 = vmatmul.f32.gmra.mxu0 %v90
    %v154 = vpop.f32.mrf.mxu0
    %v155 = vadd.f32 0.0, %v154
    %156 = vmatmul.f32.gmra.mxu0 %v93
    %v157 = vpop.f32.mrf.mxu0
    %v158 = vadd.f32 0.0, %v157
    %159 = vmatmul.f32.gmra.mxu0 %v96
    %v160 = vpop.f32.mrf.mxu0
    %v161 = vadd.f32 0.0, %v160
    %162 = vmatmul.f32.gmra.mxu0 %v99
    %v163 = vpop.f32.mrf.mxu0
    %v164 = vadd.f32 0.0, %v163
    %165 = vmatmul.f32.gmra.mxu0 %v102
    %v166 = vpop.f32.mrf.mxu0
    %v167 = vadd.f32 0.0, %v166
    %168 = vmatmul.f32.gmra.mxu0 %v105
    %v169 = vpop.f32.mrf.mxu0
    %v170 = vadd.f32 0.0, %v169
    %171 = vmatmul.f32.gmra.mxu0 %v108
    %v172 = vpop.f32.mrf.mxu0
    %v173 = vadd.f32 0.0, %v172
    %174 = vmatmul.f32.gmra.mxu0 %v111
    %v175 = vpop.f32.mrf.mxu0
    %v176 = vadd.f32 0.0, %v175
    %177 = vmatmul.f32.gmra.mxu0 %v114
    %v178 = vpop.f32.mrf.mxu0
    %v179 = vadd.f32 0.0, %v178
    %180 = vmatmul.f32.gmra.mxu0 %v117
    %v181 = vpop.f32.mrf.mxu0
    %v182 = vadd.f32 0.0, %v181
    %183 = vmatmul.f32.gmra.mxu0 %v120
    %v184 = vpop.f32.mrf.mxu0
    %v185 = vadd.f32 0.0, %v184
    %186 = vmatmul.f32.gmra.mxu0 %v123
    %v187 = vpop.f32.mrf.mxu0
    %v188 = vadd.f32 0.0, %v187
    %189 = vmatmul.f32.gmra.mxu0 %v126
    %v190 = vpop.f32.mrf.mxu0
    %v191 = vadd.f32 0.0, %v190
    %192 = vmatmul.f32.gmra.mxu0 %v129
    %v193 = vpop.f32.mrf.mxu0
    %v194 = vadd.f32 0.0, %v193
    %195 = vdwg.mxu0
    %v196 = vld [vmem:[%s4] sm:$0xff]
    %v197 = vld [vmem:[%s4 + $0x8] sm:$0xff]
    %v198 = vld [vmem:[%s4 + $0x10] sm:$0xff]
    %v199 = vld [vmem:[%s4 + $0x18] sm:$0xff]
    %v200 = vld [vmem:[%s4 + $0x20] sm:$0xff]
    %v201 = vld [vmem:[%s4 + $0x28] sm:$0xff]
    %v202 = vld [vmem:[%s4 + $0x30] sm:$0xff]
    %v203 = vld [vmem:[%s4 + $0x38] sm:$0xff]
    %v204 = vld [vmem:[%s4 + $0x40] sm:$0xff]
    %v205 = vld [vmem:[%s4 + $0x48] sm:$0xff]
    %v206 = vld [vmem:[%s4 + $0x50] sm:$0xff]
    %v207 = vld [vmem:[%s4 + $0x58] sm:$0xff]
    %v208 = vld [vmem:[%s4 + $0x60] sm:$0xff]
    %v209 = vld [vmem:[%s4 + $0x68] sm:$0xff]
    %v210 = vld [vmem:[%s4 + $0x70] sm:$0xff]
    %v211 = vld [vmem:[%s4 + $0x78] sm:$0xff]
    %212 = vmatpush.msra.mxu0 %v211
    %213 = vmatpush.msra.mxu0 %v210
    %214 = vmatpush.msra.mxu0 %v209
    %215 = vmatpush.msra.mxu0 %v208
    %216 = vmatpush.msra.mxu0 %v207
    %217 = vmatpush.msra.mxu0 %v206
    %218 = vmatpush.msra.mxu0 %v205
    %219 = vmatpush.msra.mxu0 %v204
    %220 = vmatpush.msra.mxu0 %v203
    %221 = vmatpush.msra.mxu0 %v202
    %222 = vmatpush.msra.mxu0 %v201
    %223 = vmatpush.msra.mxu0 %v200
    %224 = vmatpush.msra.mxu0 %v199
    %225 = vmatpush.msra.mxu0 %v198
    %226 = vmatpush.msra.mxu0 %v197
    %227 = vmatpush.msra.mxu0 %v196
    %228 = vmatmul.f32.gmra.mxu0 %v149
    %v229 = vpop.f32.mrf.mxu0
    %v230 = vadd.f32 0.0, %v229
    %231 = vmatmul.f32.gmra.mxu0 %v152
    %v232 = vpop.f32.mrf.mxu0
    %v233 = vadd.f32 0.0, %v232
    %234 = vmatmul.f32.gmra.mxu0 %v155
    %v235 = vpop.f32.mrf.mxu0
    %v236 = vadd.f32 0.0, %v235
    %237 = vmatmul.f32.gmra.mxu0 %v158
    %v238 = vpop.f32.mrf.mxu0
    %v239 = vadd.f32 0.0, %v238
    %240 = vmatmul.f32.gmra.mxu0 %v161
    %v241 = vpop.f32.mrf.mxu0
    %v242 = vadd.f32 0.0, %v241
    %243 = vmatmul.f32.gmra.mxu0 %v164
    %v244 = vpop.f32.mrf.mxu0
    %v245 = vadd.f32 0.0, %v244
    %246 = vmatmul.f32.gmra.mxu0 %v167
    %v247 = vpop.f32.mrf.mxu0
    %v248 = vadd.f32 0.0, %v247
    %249 = vmatmul.f32.gmra.mxu0 %v170
    %v250 = vpop.f32.mrf.mxu0
    %v251 = vadd.f32 0.0, %v250
    %252 = vmatmul.f32.gmra.mxu0 %v173
    %v253 = vpop.f32.mrf.mxu0
    %v254 = vadd.f32 0.0, %v253
    %255 = vmatmul.f32.gmra.mxu0 %v176
    %v256 = vpop.f32.mrf.mxu0
    %v257 = vadd.f32 0.0, %v256
    %258 = vmatmul.f32.gmra.mxu0 %v179
    %v259 = vpop.f32.mrf.mxu0
    %v260 = vadd.f32 0.0, %v259
    %261 = vmatmul.f32.gmra.mxu0 %v182
    %v262 = vpop.f32.mrf.mxu0
    %v263 = vadd.f32 0.0, %v262
    %264 = vmatmul.f32.gmra.mxu0 %v185
    %v265 = vpop.f32.mrf.mxu0
    %v266 = vadd.f32 0.0, %v265
    %267 = vmatmul.f32.gmra.mxu0 %v188
    %v268 = vpop.f32.mrf.mxu0
    %v269 = vadd.f32 0.0, %v268
    %270 = vmatmul.f32.gmra.mxu0 %v191
    %v271 = vpop.f32.mrf.mxu0
    %v272 = vadd.f32 0.0, %v271
    %273 = vmatmul.f32.gmra.mxu0 %v194
    %v274 = vpop.f32.mrf.mxu0
    %v275 = vadd.f32 0.0, %v274
    %276 = vdwg.mxu0
    %v277 = vld [vmem:[%s1] sm:$0xff]
    %278 = vmatpush.msra.mxu0 %v275
    %279 = vmatpush.msra.mxu0 %v272
    %280 = vmatpush.msra.mxu0 %v269
    %281 = vmatpush.msra.mxu0 %v266
    %282 = vmatpush.msra.mxu0 %v263
    %283 = vmatpush.msra.mxu0 %v260
    %284 = vmatpush.msra.mxu0 %v257
    %285 = vmatpush.msra.mxu0 %v254
    %286 = vmatpush.msra.mxu0 %v251
    %287 = vmatpush.msra.mxu0 %v248
    %288 = vmatpush.msra.mxu0 %v245
    %289 = vmatpush.msra.mxu0 %v242
    %290 = vmatpush.msra.mxu0 %v239
    %291 = vmatpush.msra.mxu0 %v236
    %292 = vmatpush.msra.mxu0 %v233
    %293 = vmatpush.msra.mxu0 %v230
    %294 = vmatmul.f32.gmra.mxu0 %v277
    %v295 = vpop.f32.mrf.mxu0
    %v296 = vadd.f32 0.0, %v295
    %297 = vdwg.mxu0
    %v298 = vxor.u32 %v296, 2147483648
    %v299 = vmul.f32 %v298, 1.442695
    %v300 = vpow.pop %v299
    %v301 = vadd.f32 %v300, 1.0
    %v302 = vrcp.pop %v301
    %v303 = vmul.f32 %v301, %v302
    %v304 = vsub.f32 1.0, %v303
    %v305 = vmul.f32 %v302, %v304
    %v306 = vadd.f32 %v302, %v305
    %vm307 = vweird.f32 %v301
    %vm308 = vweird.f32 %v302
    %vm309 = vmor %vm307, %vm308
    %v310 = vsel %vm309, %v302, %v306
    %v311 = vand.u32 2147483647, %v301
    %vm312 = vcmp.eq.f32.partialorder %v311, 8.507059e+37
    %v313 = vand.u32 %v301, 2147483648
    %v314 = vor.u32 1.1754944e-38, %v313
    %v315 = vsel %vm312, %v314, %v310
    %v316 = vmul.f32 1.0, %v315
    %v318 = vsel %vm82, 1.0, 0
    %320 = vmatpush.msra.mxu0 0.0
    %321 = vmatpush.msra.mxu0 0.0
    %322 = vmatpush.msra.mxu0 0.0
    %323 = vmatpush.msra.mxu0 0.0
    %324 = vmatpush.msra.mxu0 0.0
    %325 = vmatpush.msra.mxu0 0.0
    %326 = vmatpush.msra.mxu0 0.0
    %327 = vmatpush.msra.mxu0 0.0
    %328 = vmatpush.msra.mxu0 0.0
    %329 = vmatpush.msra.mxu0 0.0
    %330 = vmatpush.msra.mxu0 0.0
    %331 = vmatpush.msra.mxu0 0.0
    %332 = vmatpush.msra.mxu0 0.0
    %333 = vmatpush.msra.mxu0 0.0
    %334 = vmatpush.msra.mxu0 0.0
    %335 = vmatpush.msra.mxu0 %v316
    %336 = vmatmul.f32.gmra.mxu0 %v318
    %v337 = vpop.f32.mrf.mxu0
    %v338 = vadd.f32 0.0, %v337
    %339 = vdwg.mxu0
    %v340 = vld [vmem:[%s5] sm:$0xff]
    %v341 = vld [vmem:[%s5 + $0x8] sm:$0xff]
    %v342 = vld [vmem:[%s5 + $0x10] sm:$0xff]
    %v343 = vld [vmem:[%s5 + $0x18] sm:$0xff]
    %v344 = vld [vmem:[%s5 + $0x20] sm:$0xff]
    %v345 = vld [vmem:[%s5 + $0x28] sm:$0xff]
    %v346 = vld [vmem:[%s5 + $0x30] sm:$0xff]
    %v347 = vld [vmem:[%s5 + $0x38] sm:$0xff]
    %v348 = vld [vmem:[%s5 + $0x40] sm:$0xff]
    %v349 = vld [vmem:[%s5 + $0x48] sm:$0xff]
    %v350 = vld [vmem:[%s5 + $0x50] sm:$0xff]
    %v351 = vld [vmem:[%s5 + $0x58] sm:$0xff]
    %v352 = vld [vmem:[%s5 + $0x60] sm:$0xff]
    %v353 = vld [vmem:[%s5 + $0x68] sm:$0xff]
    %v354 = vld [vmem:[%s5 + $0x70] sm:$0xff]
    %v355 = vld [vmem:[%s5 + $0x78] sm:$0xff]
    %v356 = vld [vmem:[#allocation2] sm:$0x1]
    %357 = vmatpush.msra.mxu0 %v355
    %358 = vmatpush.msra.mxu0 %v354
    %359 = vmatpush.msra.mxu0 %v353
    %360 = vmatpush.msra.mxu0 %v352
    %361 = vmatpush.msra.mxu0 %v351
    %362 = vmatpush.msra.mxu0 %v350
    %363 = vmatpush.msra.mxu0 %v349
    %364 = vmatpush.msra.mxu0 %v348
    %365 = vmatpush.msra.mxu0 %v347
    %366 = vmatpush.msra.mxu0 %v346
    %367 = vmatpush.msra.mxu0 %v345
    %368 = vmatpush.msra.mxu0 %v344
    %369 = vmatpush.msra.mxu0 %v343
    %370 = vmatpush.msra.mxu0 %v342
    %371 = vmatpush.msra.mxu0 %v341
    %372 = vmatpush.msra.mxu0 %v340
    %373 = vmatmul.f32.gmra.mxu0 %v338
    %v374 = vpop.f32.mrf.mxu0
    %v375 = vadd.f32 %v356, %v374
    %376 = vdwg.mxu0
    %vm377 = vcmask 0
    %378 = vst.msk [vmem:[#allocation3] sm:$0x1] %vm377, %v375
    // Predicated region
    $region30: #{dhgcn_forward.3} parent=1 // pred_check
      _
    $region31: #{dhgcn_forward.3} parent=1 // pred_check_branch
      %380 = sbr.rel (0) target = $region33
    $region32: #{dhgcn_forward.3} parent=1 // pred_region
      %382 = vsyncadd [#allocation4], 0
      %s384 = sshll.u32 [#allocation3], 4
      %s385 = int_to_ptr.vmem [resolvable:$true] %s384
      %s386 = sshll.u32 %s7, 4
      %s387 = int_to_ptr.hbm [resolvable:$true] %s386
      %389 = dma.vmem_to_hbm [thread:$0]  %s385, 16, %s387, [#allocation4]
    $region33: #{dhgcn_forward.3} parent=1 // pred_fallthru
      _
    // Predicated region
    $region34: #{dhgcn_forward.3} parent=1 // pred_check
      _
    $region35: #{dhgcn_forward.3} parent=1 // pred_check_branch
      %391 = sbr.rel (0) target = $region37
    $region36: #{dhgcn_forward.3} parent=1 // pred_region
      %393 = dma.done [#allocation4], 16
    $region37: #{dhgcn_forward.3} parent=1 // pred_fallthru
      _
    %394 = vsyncpa [#allocation4], 1

</llo_original>
